<compile_context>
chip_gen: v6e
topology: v6e:2x2x1
jax: 0.10.0
libtpu: 0.0.40
codegen_flags: <defaults>
</compile_context>

<pallas_src>
import functools

import jax
import jax.numpy as jnp
from jax.experimental import pallas as pl
from jax.experimental.pallas import tpu as pltpu


def _round_up(n: int, m: int) -> int:
    return ((n + m - 1) // m) * m


def make_polnet_kernel(pol_dim: int):
    """Kernel: y = b + sum_{i=0..P} W[i, :] * x**i via Horner's rule."""

    def polnet_kernel(x_ref, w_ref, b_ref, y_ref):
        x = x_ref[...]                            # (TB, TD) f32
        # Horner: acc = ((w_P x + w_{P-1}) x + ...) x + (w_0 + b)
        acc = w_ref[pol_dim:pol_dim + 1, :]       # (1, TD) highest coefficient
        for i in range(pol_dim - 1, -1, -1):
            c = w_ref[i:i + 1, :]                 # (1, TD), used exactly once
            if i == 0:
                c = c + b_ref[...]                # fold bias into degree-0 term
            acc = acc * x + c                     # (1,TD) broadcasts vs (TB,TD)
        if pol_dim == 0:
            # Loop never ran: result is constant per column -> broadcast
            # explicitly so the store shape matches y_ref.
            acc = jnp.broadcast_to(acc + b_ref[...], x.shape)
        y_ref[...] = acc.astype(y_ref.dtype)

    return polnet_kernel


@functools.partial(jax.jit, static_argnames=("pol_dim", "tb", "td"))
def polnet_forward(x, w, b, *, pol_dim, tb=512, td=1024):
    """x: (B, D) f32, w: (pol_dim+1, D) f32, b: (1, D) f32 -> (B, D) f32."""
    B, D = x.shape

    # Hardware-alignment only (8 sublanes, 128 lanes) -- NOT tile multiples.
    Bp = _round_up(B, 8)
    Dp = _round_up(D, 128)
    needs_pad = (Bp != B) or (Dp != D)

    if needs_pad:
        # Minimal padding; padded rows/columns are independent and sliced
        # away below, so this is semantics-preserving.
        x_in = jnp.pad(x, ((0, Bp - B), (0, Dp - D)))
        w_in = jnp.pad(w, ((0, 0), (0, Dp - D)))
        b_in = jnp.pad(b, ((0, 0), (0, Dp - D)))
    else:
        # Zero-copy path: no pad, no slice, no extra HBM traffic.
        x_in, w_in, b_in = x, w, b

    # Tile selection.
    TB = min(tb, Bp)
    TD = min(td, Dp)

    # Small-batch heuristic: if the batch tile collapsed, widen the lane tile
    # (capped at 8192 lanes) so each x/y DMA stays large and stores stay
    # lane-dense.
    target_elems = tb * td
    if TB * TD < target_elems:
        TD = min(Dp, min(8192, _round_up(pl.cdiv(target_elems, TB), 128)))

    # v7x has 2 TensorCores: if the grid degenerated to 1x1 but the problem
    # can be split, put >= 2 blocks on a parallel axis (prefer D so w/b tiles
    # stay small; no-op cost on single-TC v5e/v6e).
    if pl.cdiv(Dp, TD) == 1 and pl.cdiv(Bp, TB) == 1:
        if Dp >= 2 * 128:
            TD = _round_up(pl.cdiv(Dp, 2), 128)
        elif Bp >= 2 * 8:
            TB = _round_up(pl.cdiv(Bp, 2), 8)

    # D tiles outer, B tiles inner -> w/b block index constant across the
    # inner loop, so their DMAs are issued once per D tile.  cdiv handles a
    # partial (overhanging) last block without padding to tile multiples.
    grid = (pl.cdiv(Dp, TD), pl.cdiv(Bp, TB))

    # Honest (unpadded) cost hint for XLA's scheduler.
    cost = pl.CostEstimate(
        flops=max(2 * pol_dim * B * D, B * D),
        transcendentals=0,
        bytes_accessed=4 * (2 * B * D + (pol_dim + 2) * D),
    )

    yp = pl.pallas_call(
        make_polnet_kernel(pol_dim),
        out_shape=jax.ShapeDtypeStruct((Bp, Dp), jnp.float32),
        grid=grid,
        in_specs=[
            pl.BlockSpec((TB, TD), lambda j, i: (i, j)),            # x
            pl.BlockSpec((pol_dim + 1, TD), lambda j, i: (0, j)),   # W
            pl.BlockSpec((1, TD), lambda j, i: (0, j)),             # b
        ],
        out_specs=pl.BlockSpec((TB, TD), lambda j, i: (i, j)),
        compiler_params=pltpu.CompilerParams(
            dimension_semantics=("parallel", "parallel")),
        cost_estimate=cost,
    )(x_in, w_in, b_in)

    if needs_pad:
        yp = yp[:B, :D]
    return yp


def polnet_reference(x, w, b, pol_dim):
    """Pure-JAX reference mirroring the PyTorch loop."""
    powers = jnp.stack([x ** i for i in range(pol_dim + 1)], axis=-1)  # (B,D,P+1)
    return jnp.einsum("bdp,pd->bd", powers, w) + b


if __name__ == "__main__":
    key = jax.random.PRNGKey(0)

    # Shapes exercise: unaligned-both-axes padding, the aligned zero-copy
    # path, and pol_dim=0 exercises the degenerate constant-polynomial path.
    for pol_dim in (4, 0):
        for (B, D_in) in ((8, 16), (10, 20), (8, 128)):
            key, kx, kw, kb = jax.random.split(key, 4)
            x = jax.random.normal(kx, (B, D_in), dtype=jnp.float32)
            w = jax.random.normal(kw, (pol_dim + 1, D_in), dtype=jnp.float32) * 0.1
            b = jax.random.normal(kb, (1, D_in), dtype=jnp.float32) * 0.1

            y = jax.block_until_ready(polnet_forward(x, w, b, pol_dim=pol_dim))
            y_ref = polnet_reference(x, w, b, pol_dim)

            assert y.shape == (B, D_in)
            assert jnp.allclose(y, y_ref, atol=1e-5, rtol=1e-4), (
                f"mismatch vs reference at pol_dim={pol_dim}, shape={(B, D_in)}")

    print("KERNEL_OK")
</pallas_src>

<mosaic_0001>
module attributes {stable_mosaic.version = 11 : i64} {
  func.func @polnet_kernel(%arg0: i32, %arg1: i32, %arg2: memref<8x128xf32, #tpu.memory_space<vmem>>, %arg3: memref<5x128xf32, #tpu.memory_space<vmem>>, %arg4: memref<1x128xf32, #tpu.memory_space<vmem>>, %arg5: memref<8x128xf32, #tpu.memory_space<vmem>>) attributes {dimension_semantics = [#tpu.dimension_semantics<parallel>, #tpu.dimension_semantics<parallel>], iteration_bounds = array<i64: 1, 1>, scalar_prefetch = 0 : i64, scratch_operands = 0 : i64, tpu.core_type = #tpu.core_type<tc>, window_params = [{transform_indices = @transform_0, window_bounds = array<i64: 8, 128>}, {transform_indices = @transform_1, window_bounds = array<i64: 5, 128>}, {transform_indices = @transform_2, window_bounds = array<i64: 1, 128>}, {transform_indices = @transform_3, window_bounds = array<i64: 8, 128>}]} {
    %c0 = arith.constant 0 : index
    %c0_0 = arith.constant 0 : index
    %0 = vector.load %arg2[%c0, %c0_0] : memref<8x128xf32, #tpu.memory_space<vmem>>, vector<8x128xf32>
    %c4 = arith.constant 4 : index
    %c0_1 = arith.constant 0 : index
    %1 = vector.load %arg3[%c4, %c0_1] : memref<5x128xf32, #tpu.memory_space<vmem>>, vector<1x128xf32>
    %c3 = arith.constant 3 : index
    %c0_2 = arith.constant 0 : index
    %2 = vector.load %arg3[%c3, %c0_2] : memref<5x128xf32, #tpu.memory_space<vmem>>, vector<1x128xf32>
    %3 = vector.broadcast %1 : vector<1x128xf32> to vector<8x128xf32>
    %4 = arith.mulf %3, %0 : vector<8x128xf32>
    %5 = vector.broadcast %2 : vector<1x128xf32> to vector<8x128xf32>
    %6 = arith.addf %4, %5 : vector<8x128xf32>
    %c2 = arith.constant 2 : index
    %c0_3 = arith.constant 0 : index
    %7 = vector.load %arg3[%c2, %c0_3] : memref<5x128xf32, #tpu.memory_space<vmem>>, vector<1x128xf32>
    %8 = arith.mulf %6, %0 : vector<8x128xf32>
    %9 = vector.broadcast %7 : vector<1x128xf32> to vector<8x128xf32>
    %10 = arith.addf %8, %9 : vector<8x128xf32>
    %c1 = arith.constant 1 : index
    %c0_4 = arith.constant 0 : index
    %11 = vector.load %arg3[%c1, %c0_4] : memref<5x128xf32, #tpu.memory_space<vmem>>, vector<1x128xf32>
    %12 = arith.mulf %10, %0 : vector<8x128xf32>
    %13 = vector.broadcast %11 : vector<1x128xf32> to vector<8x128xf32>
    %14 = arith.addf %12, %13 : vector<8x128xf32>
    %c0_5 = arith.constant 0 : index
    %c0_6 = arith.constant 0 : index
    %15 = vector.load %arg3[%c0_5, %c0_6] : memref<5x128xf32, #tpu.memory_space<vmem>>, vector<1x128xf32>
    %c0_7 = arith.constant 0 : index
    %c0_8 = arith.constant 0 : index
    %16 = vector.load %arg4[%c0_7, %c0_8] : memref<1x128xf32, #tpu.memory_space<vmem>>, vector<1x128xf32>
    %17 = arith.addf %15, %16 : vector<1x128xf32>
    %18 = arith.mulf %14, %0 : vector<8x128xf32>
    %19 = vector.broadcast %17 : vector<1x128xf32> to vector<8x128xf32>
    %20 = arith.addf %18, %19 : vector<8x128xf32>
    %c0_9 = arith.constant 0 : index
    %c0_10 = arith.constant 0 : index
    %21 = vector.load %arg5[%c0_9, %c0_10] : memref<8x128xf32, #tpu.memory_space<vmem>>, vector<8x128xf32>
    tpu.vector_store %arg5[%c0_9, %c0_10], %20 {strides = array<i32>} : memref<8x128xf32, #tpu.memory_space<vmem>>, vector<8x128xf32>,
    return
  }
  func.func @transform_0(%arg0: i32, %arg1: i32) -> (i32, i32) {
    %c0_i32 = arith.constant 0 : i32
    return %arg1, %arg0 : i32, i32
  }
  func.func @transform_1(%arg0: i32, %arg1: i32) -> (i32, i32) {
    %c0_i32 = arith.constant 0 : i32
    %c0_i32_0 = arith.constant 0 : i32
    return %c0_i32, %arg0 : i32, i32
  }
  func.func @transform_2(%arg0: i32, %arg1: i32) -> (i32, i32) {
    %c0_i32 = arith.constant 0 : i32
    %c0_i32_0 = arith.constant 0 : i32
    return %c0_i32, %arg0 : i32, i32
  }
  func.func @transform_3(%arg0: i32, %arg1: i32) -> (i32, i32) {
    %c0_i32 = arith.constant 0 : i32
    return %arg1, %arg0 : i32, i32
  }
}

</mosaic_0001>

<llo_original>
// kernel: polnet_forward.1
$region0: #{polnet_forward.1}
  #allocation0 [shape = 'u32[]', space=smem, size = 0x4, offset = 0x4, fixed_abs, tag = 'smem constant byte address 0x4 - core index']
  #allocation1 [shape = 'u32[144,128]{1,0:T(1,128)}', space=vmem, size = 0x12000, scoped, tag = 'internal scratch']
  %s0 = inlined_call_operand.vmem [shape: f32[8,128], index: 0, kind: input, shape index: {}]
  %s1 = inlined_call_operand.vmem [shape: f32[5,128], index: 1, kind: input, shape index: {}]
  %s2 = inlined_call_operand.vmem [shape: f32[1,128], index: 2, kind: input, shape index: {}]
  %s3 = inlined_call_operand.hbm [shape: f32[8,128], index: 3, kind: output, shape index: {}]
  %s4 = sld [smem:[#allocation0]]
  $region22: #{polnet_forward.1} parent=0
    _
  %s6 = ssub.s32 1, %s4
  %s7 = scalar_select 0, %s6, %s4
  $region1: #{polnet_forward.1} parent=0
    #allocation2 [shape = 'u8[4096]{0}', space=vmem, size = 0x1000, scoped, tag = 'output window, operand 0, single buffered']
    #allocation3 [shape = 's32[1]{0}', space=sflag, size = 0x4, scoped, tag = 'scoped memory for polnet_forward.1']
    %8 = vsyncpa [#allocation3], 0
    // Predicated region
    $region2: #{polnet_forward.1} parent=1 // pred_check
      _
    $region3: #{polnet_forward.1} parent=1 // pred_check_branch
      %10 = sbr.rel (0) target = $region5
    $region4: #{polnet_forward.1} parent=1 // pred_region
      _
    $region5: #{polnet_forward.1} parent=1 // pred_fallthru
      _
    // Predicated region
    $region6: #{polnet_forward.1} parent=1 // pred_check
      _
    $region7: #{polnet_forward.1} parent=1 // pred_check_branch
      %12 = sbr.rel (0) target = $region9
    $region8: #{polnet_forward.1} parent=1 // pred_region
      _
    $region9: #{polnet_forward.1} parent=1 // pred_fallthru
      _
    // Predicated region
    $region10: #{polnet_forward.1} parent=1 // pred_check
      _
    $region11: #{polnet_forward.1} parent=1 // pred_check_branch
      %14 = sbr.rel (0) target = $region13
    $region12: #{polnet_forward.1} parent=1 // pred_region
      _
    $region13: #{polnet_forward.1} parent=1 // pred_fallthru
      _
    %v15 = vld [vmem:[%s0] sm:$0xff]
    %v16 = vld [vmem:[%s1 + $0x4] sm:$0x1]
    %v17 = vld [vmem:[%s1 + $0x3] sm:$0x1]
    %v18 = vlaneseq
    %v19 = vshrl.u32 %v18, 7
    %v20 = vsub.s32 0, %v19
    %v21 = vrot.slane %v16, %v20
    %v22 = vmul.f32 %v21, %v15
    %v23 = vlaneseq
    %v24 = vshrl.u32 %v23, 7
    %v25 = vsub.s32 0, %v24
    %v26 = vrot.slane %v17, %v25
    %v27 = vadd.f32 %v22, %v26
    %v28 = vld [vmem:[%s1 + $0x2] sm:$0x1]
    %v29 = vmul.f32 %v27, %v15
    %v30 = vlaneseq
    %v31 = vshrl.u32 %v30, 7
    %v32 = vsub.s32 0, %v31
    %v33 = vrot.slane %v28, %v32
    %v34 = vadd.f32 %v29, %v33
    %v35 = vld [vmem:[%s1 + $0x1] sm:$0x1]
    %v36 = vmul.f32 %v34, %v15
    %v37 = vlaneseq
    %v38 = vshrl.u32 %v37, 7
    %v39 = vsub.s32 0, %v38
    %v40 = vrot.slane %v35, %v39
    %v41 = vadd.f32 %v36, %v40
    %v42 = vld [vmem:[%s1] sm:$0x1]
    %v43 = vld [vmem:[%s2] sm:$0x1]
    %v44 = vadd.f32 %v42, %v43
    %v45 = vmul.f32 %v41, %v15
    %v46 = vlaneseq
    %v47 = vshrl.u32 %v46, 7
    %v48 = vsub.s32 0, %v47
    %v49 = vrot.slane %v44, %v48
    %v50 = vadd.f32 %v45, %v49
    %51 = vst [vmem:[#allocation2] sm:$0xff] %v50
    // Predicated region
    $region14: #{polnet_forward.1} parent=1 // pred_check
      _
    $region15: #{polnet_forward.1} parent=1 // pred_check_branch
      %53 = sbr.rel (0) target = $region17
    $region16: #{polnet_forward.1} parent=1 // pred_region
      %s55 = ssub.s32 128, 128
      %56 = vsyncadd [#allocation3], %s55
      %s58 = sshll.u32 [#allocation2], 4
      %s59 = int_to_ptr.vmem [resolvable:$true] %s58
      %61 = dma.vmem_to_hbm [thread:$0]  %s59, 128, %s3, [#allocation3]
    $region17: #{polnet_forward.1} parent=1 // pred_fallthru
      _
    // Predicated region
    $region18: #{polnet_forward.1} parent=1 // pred_check
      _
    $region19: #{polnet_forward.1} parent=1 // pred_check_branch
      %63 = sbr.rel (0) target = $region21
    $region20: #{polnet_forward.1} parent=1 // pred_region
      %64 = dma.done [#allocation3], 128
    $region21: #{polnet_forward.1} parent=1 // pred_fallthru
      _
    %65 = vsyncpa [#allocation3], 1

</llo_original>
